<compile_context>
chip_gen: v7x
topology: tpu7x:2x2x1
jax: 0.10.0
libtpu: 0.0.40
codegen_flags: <defaults>
</compile_context>

<pallas_src>
import jax
import jax.numpy as jnp
import numpy as np
from jax.experimental import pallas as pl
from jax.experimental.pallas import tpu as pltpu

NEG_SLOPE = 0.01  # nn.LeakyReLU() default negative_slope


def _make_residual_block_kernel(H, W, C):
    WC = W * C

    def kernel(x_ref, w1_ref, b1_ref, w2_ref, b2_ref, out_ref):
        # x_ref  : (1, H+2, (W+2)*C)  zero-padded input image, NHWC with W,C fused on lanes
        # w*_ref : (9*W*C, W*C)       block-diagonal im2col weights (bf16)
        # b*_ref : (1, W*C)           bias tiled along W (f32)
        # out_ref: (1, H, W*C)

        def im2col(padded_2d):
            # (H, 9*W*C): block k = kh*3+kw holds the window shifted by (kh, kw).
            # A kw-shift in NHWC is a kw*C lane shift, so every tap is a static 2-D slice.
            return jnp.concatenate(
                [padded_2d[kh:kh + H, kw * C:kw * C + WC]
                 for kh in range(3) for kw in range(3)],
                axis=-1,
            )

        # ---- conv1: single im2col matmul on the MXU (f32 accumulation) ----
        x_bf = x_ref[0].astype(jnp.bfloat16)                 # (H+2, (W+2)*C)
        p1 = im2col(x_bf)                                     # (H, 9*W*C)
        y1 = jnp.dot(p1, w1_ref[...], preferred_element_type=jnp.float32)
        y1 = y1 + b1_ref[...]                                 # (H, W*C) f32

        # LeakyReLU, keep activation in registers (no scratch round-trip)
        act = jnp.where(y1 > 0, y1, NEG_SLOPE * y1).astype(jnp.bfloat16)

        # zero halo built in registers (2 concats) instead of a padded VMEM scratch
        zrow = jnp.zeros((1, WC), jnp.bfloat16)
        zcol = jnp.zeros((H + 2, C), jnp.bfloat16)
        act_p = jnp.concatenate([zrow, act, zrow], axis=0)    # (H+2, W*C)
        act_p = jnp.concatenate([zcol, act_p, zcol], axis=1)  # (H+2, (W+2)*C)

        # ---- conv2: single im2col matmul ----
        p2 = im2col(act_p)                                    # (H, 9*W*C)
        y2 = jnp.dot(p2, w2_ref[...], preferred_element_type=jnp.float32)
        y2 = y2 + b2_ref[...]

        # residual add: center of the padded input (kept in f32)
        res = x_ref[0, 1:1 + H, C:C + WC]
        out_ref[...] = (y2 + res)[None].astype(out_ref.dtype)

    return kernel


def residual_block(x_nchw, w1, b1, w2, b2):
    """x_nchw: (N, C, H, W); w*: (Cout, Cin, 3, 3) torch OIHW; b*: (Cout,)."""
    N, C, H, W = x_nchw.shape
    WC = W * C

    # NCHW -> NHWC, spatial zero pad, fuse (W, C) onto the lane axis (free reshape)
    x = jnp.transpose(x_nchw, (0, 2, 3, 1))
    xp = jnp.pad(x, ((0, 0), (1, 1), (1, 1), (0, 0))).reshape(N, H + 2, (W + 2) * C)

    def im2col_weights(w):
        # OIHW -> (kh, kw, Cin, Cout) -> (9, Cin, Cout)
        wk = jnp.transpose(w, (2, 3, 1, 0)).reshape(9, C, C)
        # block-diagonal expansion so the conv in (H, W*C) layout is one matmul:
        # rows k*W*C + w'*C + ci, cols w*C + co, value = wk[k, ci, co] iff w'==w
        eye = jnp.eye(W, dtype=wk.dtype)
        bd = eye[None, :, None, :, None] * wk[:, None, :, None, :]   # (9, W, C, W, C)
        return bd.reshape(9 * WC, WC).astype(jnp.bfloat16)

    w1b = im2col_weights(w1)
    w2b = im2col_weights(w2)
    b1t = jnp.tile(b1, W).reshape(1, WC).astype(jnp.float32)
    b2t = jnp.tile(b2, W).reshape(1, WC).astype(jnp.float32)

    out = pl.pallas_call(
        _make_residual_block_kernel(H, W, C),
        out_shape=jax.ShapeDtypeStruct((N, H, WC), x.dtype),
        grid_spec=pltpu.PrefetchScalarGridSpec(
            num_scalar_prefetch=0,
            grid=(N,),
            in_specs=[
                pl.BlockSpec((1, H + 2, (W + 2) * C), lambda n: (n, 0, 0)),
                pl.BlockSpec((9 * WC, WC), lambda n: (0, 0)),
                pl.BlockSpec((1, WC), lambda n: (0, 0)),
                pl.BlockSpec((9 * WC, WC), lambda n: (0, 0)),
                pl.BlockSpec((1, WC), lambda n: (0, 0)),
            ],
            out_specs=pl.BlockSpec((1, H, WC), lambda n: (n, 0, 0)),
        ),
        compiler_params=pltpu.CompilerParams(
            dimension_semantics=("parallel",),      # independent images; lets v7x split across TCs
            vmem_limit_bytes=32 * 1024 * 1024,
        ),
    )(xp, w1b, b1t, w2b, b2t)

    # (N, H, W*C) -> NHWC -> NCHW
    return jnp.transpose(out.reshape(N, H, W, C), (0, 3, 1, 2))


def residual_block_ref(x, w1, b1, w2, b2):
    """Pure-JAX f32 reference matching the PyTorch module (NCHW, OIHW)."""
    dn = jax.lax.conv_dimension_numbers(x.shape, w1.shape, ('NCHW', 'OIHW', 'NCHW'))
    y = jax.lax.conv_general_dilated(x, w1, (1, 1), 'SAME', dimension_numbers=dn)
    y = y + b1.reshape(1, -1, 1, 1)
    y = jnp.where(y > 0, y, NEG_SLOPE * y)
    y = jax.lax.conv_general_dilated(y, w2, (1, 1), 'SAME', dimension_numbers=dn)
    y = y + b2.reshape(1, -1, 1, 1)
    return y + x


if __name__ == "__main__":
    key = jax.random.PRNGKey(0)
    k_x, k_w1, k_b1, k_w2, k_b2 = jax.random.split(key, 5)

    N, C, H, W = 2, 4, 16, 16
    x = jax.random.normal(k_x, (N, C, H, W), dtype=jnp.float32)

    # deterministic synthetic parameters (shapes from nn.Conv2d(C, C, 3, padding=1))
    fan_in = C * 3 * 3
    bound = 1.0 / np.sqrt(fan_in)
    w1 = jax.random.uniform(k_w1, (C, C, 3, 3), jnp.float32, -bound, bound)
    b1 = jax.random.uniform(k_b1, (C,), jnp.float32, -bound, bound)
    w2 = jax.random.uniform(k_w2, (C, C, 3, 3), jnp.float32, -bound, bound)
    b2 = jax.random.uniform(k_b2, (C,), jnp.float32, -bound, bound)

    out = residual_block(x, w1, b1, w2, b2)
    out = jax.block_until_ready(out)

    ref = jax.block_until_ready(residual_block_ref(x, w1, b1, w2, b2))
    # bf16 MXU inputs with f32 accumulation -> bf16-appropriate tolerances
    np.testing.assert_allclose(np.asarray(out), np.asarray(ref), rtol=2e-2, atol=2e-2)

    print("KERNEL_OK")
</pallas_src>

<mosaic_0001>
module attributes {stable_mosaic.version = 11 : i64} {
  func.func @kernel(%arg0: i32, %arg1: memref<1x18x72xf32, #tpu.memory_space<vmem>>, %arg2: memref<576x64xbf16, #tpu.memory_space<vmem>>, %arg3: memref<1x64xf32, #tpu.memory_space<vmem>>, %arg4: memref<576x64xbf16, #tpu.memory_space<vmem>>, %arg5: memref<1x64xf32, #tpu.memory_space<vmem>>, %arg6: memref<1x16x64xf32, #tpu.memory_space<vmem>>) attributes {dimension_semantics = [#tpu.dimension_semantics<parallel>], iteration_bounds = array<i64: 2>, scalar_prefetch = 0 : i64, scratch_operands = 0 : i64, tpu.core_type = #tpu.core_type<tc>, window_params = [{transform_indices = @transform_0, window_bounds = array<i64: 1, 18, 72>}, {pipeline_mode = #tpu.pipeline_mode<synchronous>, transform_indices = @transform_1, window_bounds = array<i64: 576, 64>}, {pipeline_mode = #tpu.pipeline_mode<synchronous>, transform_indices = @transform_2, window_bounds = array<i64: 1, 64>}, {pipeline_mode = #tpu.pipeline_mode<synchronous>, transform_indices = @transform_3, window_bounds = array<i64: 576, 64>}, {pipeline_mode = #tpu.pipeline_mode<synchronous>, transform_indices = @transform_4, window_bounds = array<i64: 1, 64>}, {transform_indices = @transform_5, window_bounds = array<i64: 1, 16, 64>}]} {
    %c0 = arith.constant 0 : index
    %c0_0 = arith.constant 0 : index
    %c0_1 = arith.constant 0 : index
    %0 = vector.load %arg1[%c0, %c0_0, %c0_1] : memref<1x18x72xf32, #tpu.memory_space<vmem>>, vector<1x18x72xf32>
    %1 = vector.shape_cast %0 : vector<1x18x72xf32> to vector<18x72xf32>
    %2 = arith.truncf %1 : vector<18x72xf32> to vector<18x72xbf16>
    %3 = vector.extract_strided_slice %2 {offsets = [0, 0], sizes = [16, 64], strides = [1, 1]} : vector<18x72xbf16> to vector<16x64xbf16>
    %4 = vector.extract_strided_slice %2 {offsets = [0, 4], sizes = [16, 64], strides = [1, 1]} : vector<18x72xbf16> to vector<16x64xbf16>
    %5 = vector.extract_strided_slice %2 {offsets = [0, 8], sizes = [16, 64], strides = [1, 1]} : vector<18x72xbf16> to vector<16x64xbf16>
    %6 = vector.extract_strided_slice %2 {offsets = [1, 0], sizes = [16, 64], strides = [1, 1]} : vector<18x72xbf16> to vector<16x64xbf16>
    %7 = vector.extract_strided_slice %2 {offsets = [1, 4], sizes = [16, 64], strides = [1, 1]} : vector<18x72xbf16> to vector<16x64xbf16>
    %8 = vector.extract_strided_slice %2 {offsets = [1, 8], sizes = [16, 64], strides = [1, 1]} : vector<18x72xbf16> to vector<16x64xbf16>
    %9 = vector.extract_strided_slice %2 {offsets = [2, 0], sizes = [16, 64], strides = [1, 1]} : vector<18x72xbf16> to vector<16x64xbf16>
    %10 = vector.extract_strided_slice %2 {offsets = [2, 4], sizes = [16, 64], strides = [1, 1]} : vector<18x72xbf16> to vector<16x64xbf16>
    %11 = vector.extract_strided_slice %2 {offsets = [2, 8], sizes = [16, 64], strides = [1, 1]} : vector<18x72xbf16> to vector<16x64xbf16>
    %12 = tpu.concatenate %3, %4, %5, %6, %7, %8, %9, %10, %11 in 1 : vector<16x64xbf16>, vector<16x64xbf16>, vector<16x64xbf16>, vector<16x64xbf16>, vector<16x64xbf16>, vector<16x64xbf16>, vector<16x64xbf16>, vector<16x64xbf16>, vector<16x64xbf16> -> vector<16x576xbf16>
    %c0_2 = arith.constant 0 : index
    %c0_3 = arith.constant 0 : index
    %13 = vector.load %arg2[%c0_2, %c0_3] : memref<576x64xbf16, #tpu.memory_space<vmem>>, vector<576x64xbf16>
    %cst = arith.constant dense<0.000000e+00> : vector<16x64xf32>
    %14 = tpu.matmul %12, %13, %cst {dimension_numbers = #tpu.dot_dimension_numbers<[1], [0], [0], [1], [0, 0, 1, 1], [], []>} : vector<16x576xbf16>, vector<576x64xbf16>, vector<16x64xf32> -> vector<16x64xf32>
    %c0_4 = arith.constant 0 : index
    %c0_5 = arith.constant 0 : index
    %15 = vector.load %arg3[%c0_4, %c0_5] : memref<1x64xf32, #tpu.memory_space<vmem>>, vector<1x64xf32>
    %16 = vector.broadcast %15 : vector<1x64xf32> to vector<16x64xf32>
    %17 = arith.addf %14, %16 : vector<16x64xf32>
    %cst_6 = arith.constant 0.000000e+00 : f32
    %18 = vector.broadcast %cst_6 : f32 to vector<16x64xf32>
    %19 = arith.cmpf ogt, %17, %18 : vector<16x64xf32>
    %cst_7 = arith.constant 0.00999999977 : f32
    %20 = vector.broadcast %cst_7 : f32 to vector<16x64xf32>
    %21 = arith.mulf %20, %17 : vector<16x64xf32>
    %22 = arith.select %19, %17, %21 : vector<16x64xi1>, vector<16x64xf32>
    %23 = arith.truncf %22 : vector<16x64xf32> to vector<16x64xbf16>
    %cst_8 = arith.constant 0.000000e+00 : bf16
    %24 = vector.broadcast %cst_8 : bf16 to vector<1x64xbf16>
    %cst_9 = arith.constant 0.000000e+00 : bf16
    %25 = vector.broadcast %cst_9 : bf16 to vector<18x4xbf16>
    %26 = tpu.concatenate %24, %23, %24 in 0 : vector<1x64xbf16>, vector<16x64xbf16>, vector<1x64xbf16> -> vector<18x64xbf16>
    %27 = tpu.concatenate %25, %26, %25 in 1 : vector<18x4xbf16>, vector<18x64xbf16>, vector<18x4xbf16> -> vector<18x72xbf16>
    %28 = vector.extract_strided_slice %27 {offsets = [0, 0], sizes = [16, 64], strides = [1, 1]} : vector<18x72xbf16> to vector<16x64xbf16>
    %29 = vector.extract_strided_slice %27 {offsets = [0, 4], sizes = [16, 64], strides = [1, 1]} : vector<18x72xbf16> to vector<16x64xbf16>
    %30 = vector.extract_strided_slice %27 {offsets = [0, 8], sizes = [16, 64], strides = [1, 1]} : vector<18x72xbf16> to vector<16x64xbf16>
    %31 = vector.extract_strided_slice %27 {offsets = [1, 0], sizes = [16, 64], strides = [1, 1]} : vector<18x72xbf16> to vector<16x64xbf16>
    %32 = vector.extract_strided_slice %27 {offsets = [1, 4], sizes = [16, 64], strides = [1, 1]} : vector<18x72xbf16> to vector<16x64xbf16>
    %33 = vector.extract_strided_slice %27 {offsets = [1, 8], sizes = [16, 64], strides = [1, 1]} : vector<18x72xbf16> to vector<16x64xbf16>
    %34 = vector.extract_strided_slice %27 {offsets = [2, 0], sizes = [16, 64], strides = [1, 1]} : vector<18x72xbf16> to vector<16x64xbf16>
    %35 = vector.extract_strided_slice %27 {offsets = [2, 4], sizes = [16, 64], strides = [1, 1]} : vector<18x72xbf16> to vector<16x64xbf16>
    %36 = vector.extract_strided_slice %27 {offsets = [2, 8], sizes = [16, 64], strides = [1, 1]} : vector<18x72xbf16> to vector<16x64xbf16>
    %37 = tpu.concatenate %28, %29, %30, %31, %32, %33, %34, %35, %36 in 1 : vector<16x64xbf16>, vector<16x64xbf16>, vector<16x64xbf16>, vector<16x64xbf16>, vector<16x64xbf16>, vector<16x64xbf16>, vector<16x64xbf16>, vector<16x64xbf16>, vector<16x64xbf16> -> vector<16x576xbf16>
    %c0_10 = arith.constant 0 : index
    %c0_11 = arith.constant 0 : index
    %38 = vector.load %arg4[%c0_10, %c0_11] : memref<576x64xbf16, #tpu.memory_space<vmem>>, vector<576x64xbf16>
    %cst_12 = arith.constant dense<0.000000e+00> : vector<16x64xf32>
    %39 = tpu.matmul %37, %38, %cst_12 {dimension_numbers = #tpu.dot_dimension_numbers<[1], [0], [0], [1], [0, 0, 1, 1], [], []>} : vector<16x576xbf16>, vector<576x64xbf16>, vector<16x64xf32> -> vector<16x64xf32>
    %c0_13 = arith.constant 0 : index
    %c0_14 = arith.constant 0 : index
    %40 = vector.load %arg5[%c0_13, %c0_14] : memref<1x64xf32, #tpu.memory_space<vmem>>, vector<1x64xf32>
    %41 = vector.broadcast %40 : vector<1x64xf32> to vector<16x64xf32>
    %42 = arith.addf %39, %41 : vector<16x64xf32>
    %c0_15 = arith.constant 0 : index
    %c1 = arith.constant 1 : index
    %c4 = arith.constant 4 : index
    %43 = vector.load %arg1[%c0_15, %c1, %c4] : memref<1x18x72xf32, #tpu.memory_space<vmem>>, vector<1x16x64xf32>
    %44 = vector.shape_cast %43 : vector<1x16x64xf32> to vector<16x64xf32>
    %45 = arith.addf %42, %44 : vector<16x64xf32>
    %46 = vector.shape_cast %45 : vector<16x64xf32> to vector<1x16x64xf32>
    %c0_16 = arith.constant 0 : index
    %c0_17 = arith.constant 0 : index
    %c0_18 = arith.constant 0 : index
    %47 = vector.load %arg6[%c0_16, %c0_17, %c0_18] : memref<1x16x64xf32, #tpu.memory_space<vmem>>, vector<1x16x64xf32>
    tpu.vector_store %arg6[%c0_16, %c0_17, %c0_18], %46 {strides = array<i32>} : memref<1x16x64xf32, #tpu.memory_space<vmem>>, vector<1x16x64xf32>,
    return
  }
  func.func @transform_0(%arg0: i32) -> (i32, i32, i32) {
    %c0_i32 = arith.constant 0 : i32
    %c0_i32_0 = arith.constant 0 : i32
    %c0_i32_1 = arith.constant 0 : i32
    return %arg0, %c0_i32, %c0_i32_0 : i32, i32, i32
  }
  func.func @transform_1(%arg0: i32) -> (i32, i32) {
    %c0_i32 = arith.constant 0 : i32
    %c0_i32_0 = arith.constant 0 : i32
    %c0_i32_1 = arith.constant 0 : i32
    return %c0_i32, %c0_i32_0 : i32, i32
  }
  func.func @transform_2(%arg0: i32) -> (i32, i32) {
    %c0_i32 = arith.constant 0 : i32
    %c0_i32_0 = arith.constant 0 : i32
    %c0_i32_1 = arith.constant 0 : i32
    return %c0_i32, %c0_i32_0 : i32, i32
  }
  func.func @transform_3(%arg0: i32) -> (i32, i32) {
    %c0_i32 = arith.constant 0 : i32
    %c0_i32_0 = arith.constant 0 : i32
    %c0_i32_1 = arith.constant 0 : i32
    return %c0_i32, %c0_i32_0 : i32, i32
  }
  func.func @transform_4(%arg0: i32) -> (i32, i32) {
    %c0_i32 = arith.constant 0 : i32
    %c0_i32_0 = arith.constant 0 : i32
    %c0_i32_1 = arith.constant 0 : i32
    return %c0_i32, %c0_i32_0 : i32, i32
  }
  func.func @transform_5(%arg0: i32) -> (i32, i32, i32) {
    %c0_i32 = arith.constant 0 : i32
    %c0_i32_0 = arith.constant 0 : i32
    %c0_i32_1 = arith.constant 0 : i32
    return %arg0, %c0_i32, %c0_i32_0 : i32, i32, i32
  }
}

</mosaic_0001>

<llo_original>
// kernel: tpu_custom_call.1
$region0: #{tpu_custom_call.1}
  #allocation0 [shape = 'u32[]', space=smem, size = 0x4, offset = 0x4, fixed_abs, tag = 'smem constant byte address 0x4 - core index']
  #allocation1 [shape = 'u32[144,128]{1,0:T(1,128)}', space=vmem, size = 0x12000, scoped, tag = 'internal scratch']
  %s0 = inlined_call_operand.vmem [shape: f32[2,18,72], index: 0, kind: input, shape index: {}]
  %s1 = inlined_call_operand.vmem [shape: bf16[576,64], index: 1, kind: input, shape index: {}]
  %s2 = inlined_call_operand.vmem [shape: f32[1,64], index: 2, kind: input, shape index: {}]
  %s3 = inlined_call_operand.vmem [shape: bf16[576,64], index: 3, kind: input, shape index: {}]
  %s4 = inlined_call_operand.vmem [shape: f32[1,64], index: 4, kind: input, shape index: {}]
  %s5 = inlined_call_operand.hbm [shape: f32[2,16,64], index: 5, kind: output, shape index: {}]
  %s6 = sld [smem:[#allocation0]]
  $region53: #{tpu_custom_call.1} parent=0
    _
  %s8 = ssub.s32 1, %s6
  %s9 = scalar_select 0, %s8, %s6
  $region1: #{tpu_custom_call.1} parent=0
    #allocation2 [shape = 'u8[16384]{0}', space=vmem, size = 0x4000, scoped, tag = 'output window, operand 0']
    #allocation3 [shape = 's32[2]{0}', space=sflag, size = 0x8, scoped, tag = 'scoped memory for tpu_custom_call.1']
    %10 = vsyncpa [#allocation3], 0
    %s11 = scalar_lea.sflag [#allocation3], 1
    %12 = vsyncpa %s11, 0
    loop: start=0, step=1, limit=4
    $region2: #{tpu_custom_call.1} parent=1 // loop_pre_header
      _
    $region3: #{tpu_custom_call.1} parent=1 // loop_header
      %s14 = sphi 0, %s18
      %p15 = scmp.ge.s32.totalorder %s14, 4
      %s24 = sphi 0, %s26
      %s27 = sphi 0, %s24
      %s28 = sphi 0, %s27
      %s44 = sphi 0, %s28
      %s48 = sphi 0, %s48
      %s50 = sphi 0, %s48
      %s51 = sphi 0, %s50
      %s65 = sphi 0, %s51
      %s69 = sphi 0, %s69
      %s71 = sphi 0, %s69
      %s72 = sphi 0, %s71
      %s86 = sphi 0, %s72
      %s90 = sphi 0, %s90
      %s92 = sphi 0, %s90
      %s93 = sphi 0, %s92
      %s107 = sphi 0, %s93
      %s111 = sphi 0, %s111
      %s113 = sphi 0, %s111
      %s114 = sphi 0, %s113
      %s128 = sphi 0, %s114
      %s134 = sphi 0, %s136
      %s137 = sphi 0, %s134
      %s138 = sphi 0, %s137
      %s154 = sphi 0, %s138
    $region4: #{tpu_custom_call.1} parent=1 // loop_header_branch
      %17 = sbr.rel (%p15) target = $region8
    $region5: #{tpu_custom_call.1} parent=1 // loop_body
      %s19 = ssub.s32 %s14, 1
      %s20 = ssub.s32 %s14, 2
      %s21 = sadd.s32 %s14, 1
      %s22 = ssub.s32 %s14, %s21
      %p23 = scmp.eq.s32.totalorder %s22, 0
      %s25 = sadd.s32 %s24, 1
      %s26 = scalar_select %p23, %s24, %s25
      %p29 = pneg %p23
      %p30 = scmp.eq.s32.totalorder %s14, 1
      %p31 = por %p29, %p30
      %p32 = scmp.ne.s32.totalorder %s24, %s27
      %p33 = scmp.eq.s32.totalorder %s14, 0
      %p34 = por %p32, %p33
      %p35 = scmp.ne.s32.totalorder %s24, %s27
      %p36 = scmp.eq.s32.totalorder %s19, 1
      %p37 = por %p35, %p36
      %p38 = scmp.ne.s32.totalorder %s27, %s28
      %p39 = scmp.eq.s32.totalorder %s19, 0
      %p40 = por %p38, %p39
      %p41 = scmp.ne.s32.totalorder %s27, %s28
      %p42 = scmp.eq.s32.totalorder %s20, 1
      %p43 = por %p41, %p42
      %p45 = scmp.ne.s32.totalorder %s28, %s44
      %p46 = scmp.eq.s32.totalorder %s20, 0
      %p47 = por %p45, %p46
      %s49 = sadd.s32 %s48, 1
      %p52 = scmp.eq.s32.totalorder %s14, 1
      %p53 = scmp.ne.s32.totalorder %s48, %s50
      %p54 = scmp.eq.s32.totalorder %s14, 0
      %p55 = por %p53, %p54
      %p56 = scmp.ne.s32.totalorder %s48, %s50
      %p57 = scmp.eq.s32.totalorder %s19, 1
      %p58 = por %p56, %p57
      %p59 = scmp.ne.s32.totalorder %s50, %s51
      %p60 = scmp.eq.s32.totalorder %s19, 0
      %p61 = por %p59, %p60
      %p62 = scmp.ne.s32.totalorder %s50, %s51
      %p63 = scmp.eq.s32.totalorder %s20, 1
      %p64 = por %p62, %p63
      %p66 = scmp.ne.s32.totalorder %s51, %s65
      %p67 = scmp.eq.s32.totalorder %s20, 0
      %p68 = por %p66, %p67
      %s70 = sadd.s32 %s69, 1
      %p73 = scmp.eq.s32.totalorder %s14, 1
      %p74 = scmp.ne.s32.totalorder %s69, %s71
      %p75 = scmp.eq.s32.totalorder %s14, 0
      %p76 = por %p74, %p75
      %p77 = scmp.ne.s32.totalorder %s69, %s71
      %p78 = scmp.eq.s32.totalorder %s19, 1
      %p79 = por %p77, %p78
      %p80 = scmp.ne.s32.totalorder %s71, %s72
      %p81 = scmp.eq.s32.totalorder %s19, 0
      %p82 = por %p80, %p81
      %p83 = scmp.ne.s32.totalorder %s71, %s72
      %p84 = scmp.eq.s32.totalorder %s20, 1
      %p85 = por %p83, %p84
      %p87 = scmp.ne.s32.totalorder %s72, %s86
      %p88 = scmp.eq.s32.totalorder %s20, 0
      %p89 = por %p87, %p88
      %s91 = sadd.s32 %s90, 1
      %p94 = scmp.eq.s32.totalorder %s14, 1
      %p95 = scmp.ne.s32.totalorder %s90, %s92
      %p96 = scmp.eq.s32.totalorder %s14, 0
      %p97 = por %p95, %p96
      %p98 = scmp.ne.s32.totalorder %s90, %s92
      %p99 = scmp.eq.s32.totalorder %s19, 1
      %p100 = por %p98, %p99
      %p101 = scmp.ne.s32.totalorder %s92, %s93
      %p102 = scmp.eq.s32.totalorder %s19, 0
      %p103 = por %p101, %p102
      %p104 = scmp.ne.s32.totalorder %s92, %s93
      %p105 = scmp.eq.s32.totalorder %s20, 1
      %p106 = por %p104, %p105
      %p108 = scmp.ne.s32.totalorder %s93, %s107
      %p109 = scmp.eq.s32.totalorder %s20, 0
      %p110 = por %p108, %p109
      %s112 = sadd.s32 %s111, 1
      %p115 = scmp.eq.s32.totalorder %s14, 1
      %p116 = scmp.ne.s32.totalorder %s111, %s113
      %p117 = scmp.eq.s32.totalorder %s14, 0
      %p118 = por %p116, %p117
      %p119 = scmp.ne.s32.totalorder %s111, %s113
      %p120 = scmp.eq.s32.totalorder %s19, 1
      %p121 = por %p119, %p120
      %p122 = scmp.ne.s32.totalorder %s113, %s114
      %p123 = scmp.eq.s32.totalorder %s19, 0
      %p124 = por %p122, %p123
      %p125 = scmp.ne.s32.totalorder %s113, %s114
      %p126 = scmp.eq.s32.totalorder %s20, 1
      %p127 = por %p125, %p126
      %p129 = scmp.ne.s32.totalorder %s114, %s128
      %p130 = scmp.eq.s32.totalorder %s20, 0
      %p131 = por %p129, %p130
      %s132 = ssub.s32 %s14, %s21
      %p133 = scmp.eq.s32.totalorder %s132, 0
      %s135 = sadd.s32 %s134, 1
      %s136 = scalar_select %p133, %s134, %s135
      %p139 = pneg %p133
      %p140 = scmp.eq.s32.totalorder %s14, 1
      %p141 = por %p139, %p140
      %p142 = scmp.ne.s32.totalorder %s134, %s137
      %p143 = scmp.eq.s32.totalorder %s14, 0
      %p144 = por %p142, %p143
      %p145 = scmp.ne.s32.totalorder %s134, %s137
      %p146 = scmp.eq.s32.totalorder %s19, 1
      %p147 = por %p145, %p146
      %p148 = scmp.ne.s32.totalorder %s137, %s138
      %p149 = scmp.eq.s32.totalorder %s19, 0
      %p150 = por %p148, %p149
      %p151 = scmp.ne.s32.totalorder %s137, %s138
      %p152 = scmp.eq.s32.totalorder %s20, 1
      %p153 = por %p151, %p152
      %p155 = scmp.ne.s32.totalorder %s138, %s154
      %p156 = scmp.eq.s32.totalorder %s20, 0
      %p157 = por %p155, %p156
      %p158 = scmp.le.s32.totalorder 1, %s14
      %p159 = scmp.lt.s32.totalorder %s14, 3
      %p160 = pnand %p158, %p159
      %p161 = pneg %p160
      // Predicated region
      $region9: #{tpu_custom_call.1} parent=5 // pred_check
        _
      $region10: #{tpu_custom_call.1} parent=5 // pred_check_branch
        %163 = sbr.rel (%p160) target = $region12
      $region11: #{tpu_custom_call.1} parent=5 // pred_region
        %s164 = ssub.s32 %s14, 1
        // Predicated region
        $region13: #{tpu_custom_call.1} parent=11 // pred_check
          %p165 = pneg %p61
        $region14: #{tpu_custom_call.1} parent=11 // pred_check_branch
          %167 = sbr.rel (%p165) target = $region16
        $region15: #{tpu_custom_call.1} parent=11 // pred_region
          _
        $region16: #{tpu_custom_call.1} parent=11 // pred_fallthru
          _
        // Predicated region
        $region17: #{tpu_custom_call.1} parent=11 // pred_check
          %p168 = pneg %p82
        $region18: #{tpu_custom_call.1} parent=11 // pred_check_branch
          %170 = sbr.rel (%p168) target = $region20
        $region19: #{tpu_custom_call.1} parent=11 // pred_region
          _
        $region20: #{tpu_custom_call.1} parent=11 // pred_fallthru
          _
        // Predicated region
        $region21: #{tpu_custom_call.1} parent=11 // pred_check
          %p171 = pneg %p103
        $region22: #{tpu_custom_call.1} parent=11 // pred_check_branch
          %173 = sbr.rel (%p171) target = $region24
        $region23: #{tpu_custom_call.1} parent=11 // pred_region
          _
        $region24: #{tpu_custom_call.1} parent=11 // pred_fallthru
          _
        // Predicated region
        $region25: #{tpu_custom_call.1} parent=11 // pred_check
          %p174 = pneg %p124
        $region26: #{tpu_custom_call.1} parent=11 // pred_check_branch
          %176 = sbr.rel (%p174) target = $region28
        $region27: #{tpu_custom_call.1} parent=11 // pred_region
          _
        $region28: #{tpu_custom_call.1} parent=11 // pred_fallthru
          _
      $region12: #{tpu_custom_call.1} parent=5 // pred_fallthru
        _
      %p177 = scmp.lt.s32.totalorder %s14, 2
      // Predicated region
      $region29: #{tpu_custom_call.1} parent=5 // pred_check
        %p178 = pneg %p177
      $region30: #{tpu_custom_call.1} parent=5 // pred_check_branch
        %180 = sbr.rel (%p178) target = $region32
      $region31: #{tpu_custom_call.1} parent=5 // pred_region
        // Predicated region
        $region33: #{tpu_custom_call.1} parent=31 // pred_check
          %p181 = pneg %p34
        $region34: #{tpu_custom_call.1} parent=31 // pred_check_branch
          %183 = sbr.rel (%p181) target = $region36
        $region35: #{tpu_custom_call.1} parent=31 // pred_region
          %p184 = scmp.lt.s32.totalorder %s14, 1
          %s185 = scalar_select %p184, %s14, 1
          %s186 = smul.addr %s185, 3
          %s187 = smul.addr %s186, 8
          %s188 = scalar_lea.vmem %s0, %s187
        $region36: #{tpu_custom_call.1} parent=31 // pred_fallthru
          _
      $region32: #{tpu_custom_call.1} parent=5 // pred_fallthru
        _
      %p189 = scmp.le.s32.totalorder 1, %s14
      %p190 = scmp.lt.s32.totalorder %s14, 3
      %p191 = pnand %p189, %p190
      %p192 = pneg %p191
      // Predicated region
      $region37: #{tpu_custom_call.1} parent=5 // pred_check
        _
      $region38: #{tpu_custom_call.1} parent=5 // pred_check_branch
        %194 = sbr.rel (%p191) target = $region40
      $region39: #{tpu_custom_call.1} parent=5 // pred_region
        %s195 = ssub.s32 %s14, 1
        %p196 = scmp.lt.s32.totalorder %s19, 1
        %s197 = scalar_select %p196, %s19, 1
        %s198 = smul.addr %s197, 3
        %s199 = smul.addr %s198, 8
        %s200 = scalar_lea.vmem %s0, %s199
        %p201 = pneg %p40
        %p202 = pneg %p37
        %p203 = pneg %p61
        %p204 = pneg %p58
        %p205 = pneg %p82
        %p206 = pneg %p79
        %p207 = pneg %p103
        %p208 = pneg %p100
        %p209 = pneg %p124
        %p210 = pneg %p121
        %p211 = pneg %p150
        %p212 = pneg %p147
        %s213 = sand.u32 %s137, 1
        %s214 = scalar_lea.sflag [#allocation3], %s213
        %s215 = sand.u32 %s137, 1
        %s216 = smul.addr %s215, 16
        %s217 = scalar_lea.vmem [#allocation2], %s216
        %p218 = scmp.lt.s32.totalorder %s19, 1
        %s219 = scalar_select %p218, %s19, 1
        %s220 = smul.addr %s219, 3
        %s221 = smul.addr %s220, 8
        %s222 = scalar_lea.vmem %s0, %s221
        %v224 = vld [vmem:[%s222] sm:$0xff]
        %v225 = vld [vmem:[%s222 + $0x8] sm:$0xff]
        %v226 = vld [vmem:[%s222 + $0x10] sm:$0x3]
        %v227 = vpack.c.bf16 %v225, %v224
        %v228 = vpack.c.bf16 %v226, %v226
        %230 = vrot.lane.b32.xlu0 %v227, 60
        %v231 = vpop.permute.xlu0 %230
        %232 = vrot.lane.b32.xlu0 %v227, 120
        %v233 = vpop.permute.xlu0 %232
        %vm234 = vsmask.f32 7424
        %v236 = vshrl.u32 %v227, 16
        %v238 = vshll.u32 %v227, 16
        %v240 = vrot.slane %v238, 1
        %v241 = vor.u32 %v236, %v240
        %v243 = vshll.u32 %v228, 16
        %v245 = vrot.slane %v243, 1
        %v246 = vsel %vm234, %v241, %v245
        %247 = vrot.lane.b32.xlu0 %v246, 64
        %v248 = vpop.permute.xlu0 %247
        %249 = vrot.lane.b32.xlu0 %v246, 124
        %v250 = vpop.permute.xlu0 %249
        %251 = vrot.lane.b32.xlu0 %v246, 56
        %v252 = vpop.permute.xlu0 %251
        %vm254 = vcmask 1046528
        %v255 = vrot.slane %v227, 1
        %v256 = vrot.slane %v228, 1
        %v257 = vsel %vm254, %v255, %v256
        %258 = vrot.lane.b32.xlu0 %v257, 60
        %v259 = vpop.permute.xlu0 %258
        %260 = vrot.lane.b32.xlu0 %v257, 120
        %v261 = vpop.permute.xlu0 %260
        %vm262 = vcmask 523264
        %v264 = vsel %vm262, %v227, %v231
        %v268 = vsel %vm262, %v233, %v248
        %v272 = vsel %vm262, %v250, %v252
        %v276 = vsel %vm262, %v257, %v259
        %v278 = vld [vmem:[%s1] sm:$0xf]
        %v279 = vld [vmem:[%s1 + $0x4] sm:$0xf]
        %v280 = vld [vmem:[%s1 + $0x8] sm:$0xf]
        %v281 = vld [vmem:[%s1 + $0xc] sm:$0xf]
        %v282 = vld [vmem:[%s1 + $0x10] sm:$0xf]
        %v283 = vld [vmem:[%s1 + $0x14] sm:$0xf]
        %v284 = vld [vmem:[%s1 + $0x18] sm:$0xf]
        %v285 = vld [vmem:[%s1 + $0x1c] sm:$0xf]
        %v286 = vld [vmem:[%s1 + $0x20] sm:$0xf]
        %v287 = vld [vmem:[%s1 + $0x24] sm:$0xf]
        %v288 = vld [vmem:[%s1 + $0x28] sm:$0xf]
        %v289 = vld [vmem:[%s1 + $0x2c] sm:$0xf]
        %v290 = vld [vmem:[%s1 + $0x30] sm:$0xf]
        %v291 = vld [vmem:[%s1 + $0x34] sm:$0xf]
        %v292 = vld [vmem:[%s1 + $0x38] sm:$0xf]
        %v293 = vld [vmem:[%s1 + $0x3c] sm:$0xf]
        %v294 = vld [vmem:[%s1 + $0x40] sm:$0xf]
        %v295 = vld [vmem:[%s1 + $0x44] sm:$0xf]
        %v296 = vld [vmem:[%s1 + $0x48] sm:$0xf]
        %v297 = vld [vmem:[%s1 + $0x4c] sm:$0xf]
        %v298 = vld [vmem:[%s1 + $0x50] sm:$0xf]
        %v299 = vld [vmem:[%s1 + $0x54] sm:$0xf]
        %v300 = vld [vmem:[%s1 + $0x58] sm:$0xf]
        %v301 = vld [vmem:[%s1 + $0x5c] sm:$0xf]
        %v302 = vld [vmem:[%s1 + $0x60] sm:$0xf]
        %v303 = vld [vmem:[%s1 + $0x64] sm:$0xf]
        %v304 = vld [vmem:[%s1 + $0x68] sm:$0xf]
        %v305 = vld [vmem:[%s1 + $0x6c] sm:$0xf]
        %v306 = vld [vmem:[%s1 + $0x70] sm:$0xf]
        %v307 = vld [vmem:[%s1 + $0x74] sm:$0xf]
        %v308 = vld [vmem:[%s1 + $0x78] sm:$0xf]
        %v309 = vld [vmem:[%s1 + $0x7c] sm:$0xf]
        %v310 = vld [vmem:[%s1 + $0x80] sm:$0xf]
        %v311 = vld [vmem:[%s1 + $0x84] sm:$0xf]
        %v312 = vld [vmem:[%s1 + $0x88] sm:$0xf]
        %v313 = vld [vmem:[%s1 + $0x8c] sm:$0xf]
        %v314 = vld [vmem:[%s1 + $0x90] sm:$0xf]
        %v315 = vld [vmem:[%s1 + $0x94] sm:$0xf]
        %v316 = vld [vmem:[%s1 + $0x98] sm:$0xf]
        %v317 = vld [vmem:[%s1 + $0x9c] sm:$0xf]
        %v318 = vld [vmem:[%s1 + $0xa0] sm:$0xf]
        %v319 = vld [vmem:[%s1 + $0xa4] sm:$0xf]
        %v320 = vld [vmem:[%s1 + $0xa8] sm:$0xf]
        %v321 = vld [vmem:[%s1 + $0xac] sm:$0xf]
        %v322 = vld [vmem:[%s1 + $0xb0] sm:$0xf]
        %v323 = vld [vmem:[%s1 + $0xb4] sm:$0xf]
        %v324 = vld [vmem:[%s1 + $0xb8] sm:$0xf]
        %v325 = vld [vmem:[%s1 + $0xbc] sm:$0xf]
        %v326 = vld [vmem:[%s1 + $0xc0] sm:$0xf]
        %v327 = vld [vmem:[%s1 + $0xc4] sm:$0xf]
        %v328 = vld [vmem:[%s1 + $0xc8] sm:$0xf]
        %v329 = vld [vmem:[%s1 + $0xcc] sm:$0xf]
        %v330 = vld [vmem:[%s1 + $0xd0] sm:$0xf]
        %v331 = vld [vmem:[%s1 + $0xd4] sm:$0xf]
        %v332 = vld [vmem:[%s1 + $0xd8] sm:$0xf]
        %v333 = vld [vmem:[%s1 + $0xdc] sm:$0xf]
        %v334 = vld [vmem:[%s1 + $0xe0] sm:$0xf]
        %v335 = vld [vmem:[%s1 + $0xe4] sm:$0xf]
        %v336 = vld [vmem:[%s1 + $0xe8] sm:$0xf]
        %v337 = vld [vmem:[%s1 + $0xec] sm:$0xf]
        %v338 = vld [vmem:[%s1 + $0xf0] sm:$0xf]
        %v339 = vld [vmem:[%s1 + $0xf4] sm:$0xf]
        %v340 = vld [vmem:[%s1 + $0xf8] sm:$0xf]
        %v341 = vld [vmem:[%s1 + $0xfc] sm:$0xf]
        %v342 = vld [vmem:[%s1 + $0x100] sm:$0xf]
        %v343 = vld [vmem:[%s1 + $0x104] sm:$0xf]
        %v344 = vld [vmem:[%s1 + $0x108] sm:$0xf]
        %v345 = vld [vmem:[%s1 + $0x10c] sm:$0xf]
        %v346 = vld [vmem:[%s1 + $0x110] sm:$0xf]
        %v347 = vld [vmem:[%s1 + $0x114] sm:$0xf]
        %v348 = vld [vmem:[%s1 + $0x118] sm:$0xf]
        %v349 = vld [vmem:[%s1 + $0x11c] sm:$0xf]
        %v350 = vld [vmem:[%s2] sm:$0x1]
        %v352 = vlaneseq
        %v353 = vshrl.u32 %v352, 7
        %v354 = vsub.s32 0, %v353
        %v355 = vrot.slane %v350, %v354
        %v429 = vunpack.c.l.b16 %v278
        %v430 = vunpack.c.l.b16 %v279
        %v431 = vunpack.c.l.b16 %v280
        %v432 = vunpack.c.l.b16 %v281
        %v433 = vunpack.c.l.b16 %v282
        %v434 = vunpack.c.l.b16 %v283
        %v435 = vunpack.c.l.b16 %v284
        %v436 = vunpack.c.l.b16 %v285
        %v437 = vunpack.c.l.b16 %v286
        %v438 = vunpack.c.l.b16 %v287
        %v439 = vunpack.c.l.b16 %v288
        %v440 = vunpack.c.l.b16 %v289
        %v441 = vunpack.c.l.b16 %v290
        %v442 = vunpack.c.l.b16 %v291
        %v443 = vunpack.c.l.b16 %v292
        %v444 = vunpack.c.l.b16 %v293
        %v445 = vunpack.c.l.b16 %v294
        %v446 = vunpack.c.l.b16 %v295
        %v447 = vunpack.c.l.b16 %v296
        %v448 = vunpack.c.l.b16 %v297
        %v449 = vunpack.c.l.b16 %v298
        %v450 = vunpack.c.l.b16 %v299
        %v451 = vunpack.c.l.b16 %v300
        %v452 = vunpack.c.l.b16 %v301
        %v453 = vunpack.c.l.b16 %v302
        %v454 = vunpack.c.l.b16 %v303
        %v455 = vunpack.c.l.b16 %v304
        %v456 = vunpack.c.l.b16 %v305
        %v457 = vunpack.c.l.b16 %v306
        %v458 = vunpack.c.l.b16 %v307
        %v459 = vunpack.c.l.b16 %v308
        %v460 = vunpack.c.l.b16 %v309
        %v461 = vunpack.c.l.b16 %v310
        %v462 = vunpack.c.l.b16 %v311
        %v463 = vunpack.c.l.b16 %v312
        %v464 = vunpack.c.l.b16 %v313
        %v465 = vunpack.c.l.b16 %v314
        %v466 = vunpack.c.l.b16 %v315
        %v467 = vunpack.c.l.b16 %v316
        %v468 = vunpack.c.l.b16 %v317
        %v469 = vunpack.c.l.b16 %v318
        %v470 = vunpack.c.l.b16 %v319
        %v471 = vunpack.c.l.b16 %v320
        %v472 = vunpack.c.l.b16 %v321
        %v473 = vunpack.c.l.b16 %v322
        %v474 = vunpack.c.l.b16 %v323
        %v475 = vunpack.c.l.b16 %v324
        %v476 = vunpack.c.l.b16 %v325
        %v477 = vunpack.c.l.b16 %v326
        %v478 = vunpack.c.l.b16 %v327
        %v479 = vunpack.c.l.b16 %v328
        %v480 = vunpack.c.l.b16 %v329
        %v481 = vunpack.c.l.b16 %v330
        %v482 = vunpack.c.l.b16 %v331
        %v483 = vunpack.c.l.b16 %v332
        %v484 = vunpack.c.l.b16 %v333
        %v485 = vunpack.c.l.b16 %v334
        %v486 = vunpack.c.l.b16 %v335
        %v487 = vunpack.c.l.b16 %v336
        %v488 = vunpack.c.l.b16 %v337
        %v489 = vunpack.c.l.b16 %v338
        %v490 = vunpack.c.l.b16 %v339
        %v491 = vunpack.c.l.b16 %v340
        %v492 = vunpack.c.l.b16 %v341
        %v493 = vunpack.c.l.b16 %v342
        %v494 = vunpack.c.l.b16 %v343
        %v495 = vunpack.c.l.b16 %v344
        %v496 = vunpack.c.l.b16 %v345
        %v497 = vunpack.c.l.b16 %v346
        %v498 = vunpack.c.l.b16 %v347
        %v499 = vunpack.c.l.b16 %v348
        %v500 = vunpack.c.l.b16 %v349
        %v501 = vpack.c.b16 %v430, %v429
        %v502 = vpack.c.b16 %v432, %v431
        %v503 = vpack.c.b16 %v434, %v433
        %v504 = vpack.c.b16 %v436, %v435
        %v505 = vpack.c.b16 %v438, %v437
        %v506 = vpack.c.b16 %v440, %v439
        %v507 = vpack.c.b16 %v442, %v441
        %v508 = vpack.c.b16 %v444, %v443
        %v509 = vpack.c.b16 %v446, %v445
        %v510 = vpack.c.b16 %v448, %v447
        %v511 = vpack.c.b16 %v450, %v449
        %v512 = vpack.c.b16 %v452, %v451
        %v513 = vpack.c.b16 %v454, %v453
        %v514 = vpack.c.b16 %v456, %v455
        %v515 = vpack.c.b16 %v458, %v457
        %v516 = vpack.c.b16 %v460, %v459
        %v517 = vpack.c.b16 %v462, %v461
        %v518 = vpack.c.b16 %v464, %v463
        %v519 = vpack.c.b16 %v466, %v465
        %v520 = vpack.c.b16 %v468, %v467
        %v521 = vpack.c.b16 %v470, %v469
        %v522 = vpack.c.b16 %v472, %v471
        %v523 = vpack.c.b16 %v474, %v473
        %v524 = vpack.c.b16 %v476, %v475
        %v525 = vpack.c.b16 %v478, %v477
        %v526 = vpack.c.b16 %v480, %v479
        %v527 = vpack.c.b16 %v482, %v481
        %v528 = vpack.c.b16 %v484, %v483
        %v529 = vpack.c.b16 %v486, %v485
        %v530 = vpack.c.b16 %v488, %v487
        %v531 = vpack.c.b16 %v490, %v489
        %v532 = vpack.c.b16 %v492, %v491
        %v533 = vpack.c.b16 %v494, %v493
        %v534 = vpack.c.b16 %v496, %v495
        %v535 = vpack.c.b16 %v498, %v497
        %v536 = vpack.c.b16 %v500, %v499
        %v574 = vsel %vm262, %v261, 0
        %576 = vmatprep.subr.bf16.mxu0 0
        %577 = vmatpush1.bf16.msra.mxu0 %v501
        %578 = vmatprep.subr.bf16.mxu0 0
        %579 = vmatpush1.bf16.msra.mxu0 %v502
        %580 = vmatprep.subr.bf16.mxu0 0
        %581 = vmatpush1.bf16.msra.mxu0 %v503
        %582 = vmatprep.subr.bf16.mxu0 0
        %583 = vmatpush1.bf16.msra.mxu0 %v504
        %584 = vmatprep.subr.bf16.mxu0 0
        %585 = vmatpush1.bf16.msra.mxu0 %v505
        %586 = vmatprep.subr.bf16.mxu0 0
        %587 = vmatpush1.bf16.msra.mxu0 %v506
        %588 = vmatprep.subr.bf16.mxu0 0
        %589 = vmatpush1.bf16.msra.mxu0 %v507
        %590 = vmatprep.subr.bf16.mxu0 0
        %591 = vmatpush1.bf16.msra.mxu0 %v508
        %592 = vmatprep.subr.bf16.mxu0 0
        %593 = vmatpush1.bf16.msra.mxu0 %v509
        %594 = vmatprep.subr.bf16.mxu0 0
        %595 = vmatpush1.bf16.msra.mxu0 %v510
        %596 = vmatprep.subr.bf16.mxu0 0
        %597 = vmatpush1.bf16.msra.mxu0 %v511
        %598 = vmatprep.subr.bf16.mxu0 0
        %599 = vmatpush1.bf16.msra.mxu0 %v512
        %600 = vmatprep.subr.bf16.mxu0 0
        %601 = vmatpush1.bf16.msra.mxu0 %v513
        %602 = vmatprep.subr.bf16.mxu0 0
        %603 = vmatpush1.bf16.msra.mxu0 %v514
        %604 = vmatprep.subr.bf16.mxu0 0
        %605 = vmatpush1.bf16.msra.mxu0 %v515
        %606 = vmatprep.subr.bf16.mxu0 0
        %607 = vmatpush1.bf16.msra.mxu0 %v516
        %608 = vmatprep.mubr.bf16.mxu0 %v268
        %609 = vmatmul.mubr.bf16.gmra.mrb[0].mxu0 %v264
        %v610 = vpop.f32.mrb[0].mxu0
        %v611 = vadd.f32 %v355, %v610
        %v612 = vpop.f32.mrb[0].mxu0
        %v613 = vpop.f32.mrb[0].mxu0
        %v614 = vadd.f32 %v355, %v613
        %v615 = vpop.f32.mrb[0].mxu0
        %616 = vdwg.mxu0
        %617 = vmatprep.subr.bf16.mxu0 0
        %618 = vmatpush1.bf16.msra.mxu0 %v517
        %619 = vmatprep.subr.bf16.mxu0 0
        %620 = vmatpush1.bf16.msra.mxu0 %v518
        %621 = vmatprep.subr.bf16.mxu0 0
        %622 = vmatpush1.bf16.msra.mxu0 %v519
        %623 = vmatprep.subr.bf16.mxu0 0
        %624 = vmatpush1.bf16.msra.mxu0 %v520
        %625 = vmatprep.subr.bf16.mxu0 0
        %626 = vmatpush1.bf16.msra.mxu0 %v521
        %627 = vmatprep.subr.bf16.mxu0 0
        %628 = vmatpush1.bf16.msra.mxu0 %v522
        %629 = vmatprep.subr.bf16.mxu0 0
        %630 = vmatpush1.bf16.msra.mxu0 %v523
        %631 = vmatprep.subr.bf16.mxu0 0
        %632 = vmatpush1.bf16.msra.mxu0 %v524
        %633 = vmatprep.subr.bf16.mxu0 0
        %634 = vmatpush1.bf16.msra.mxu0 %v525
        %635 = vmatprep.subr.bf16.mxu0 0
        %636 = vmatpush1.bf16.msra.mxu0 %v526
        %637 = vmatprep.subr.bf16.mxu0 0
        %638 = vmatpush1.bf16.msra.mxu0 %v527
        %639 = vmatprep.subr.bf16.mxu0 0
        %640 = vmatpush1.bf16.msra.mxu0 %v528
        %641 = vmatprep.subr.bf16.mxu0 0
        %642 = vmatpush1.bf16.msra.mxu0 %v529
        %643 = vmatprep.subr.bf16.mxu0 0
        %644 = vmatpush1.bf16.msra.mxu0 %v530
        %645 = vmatprep.subr.bf16.mxu0 0
        %646 = vmatpush1.bf16.msra.mxu0 %v531
        %647 = vmatprep.subr.bf16.mxu0 0
        %648 = vmatpush1.bf16.msra.mxu0 %v532
        %649 = vmatprep.mubr.bf16.mxu0 %v276
        %650 = vmatmul.mubr.bf16.gmra.mrb[0].mxu0 %v272
        %v651 = vpop.f32.mrb[0].mxu0
        %v652 = vadd.f32 %v611, %v651
        %v653 = vpop.f32.mrb[0].mxu0
        %v654 = vpop.f32.mrb[0].mxu0
        %v655 = vadd.f32 %v614, %v654
        %v656 = vpop.f32.mrb[0].mxu0
        %657 = vdwg.mxu0
        %658 = vmatprep.subr.bf16.mxu0 0
        %659 = vmatpush1.bf16.msra.mxu0 %v533
        %660 = vmatprep.subr.bf16.mxu0 0
        %661 = vmatpush1.bf16.msra.mxu0 %v534
        %662 = vmatprep.subr.bf16.mxu0 0
        %663 = vmatpush1.bf16.msra.mxu0 %v535
        %664 = vmatprep.subr.bf16.mxu0 0
        %665 = vmatpush1.bf16.msra.mxu0 %v536
        %666 = vmatprep.subr.bf16.mxu0 0
        %667 = vmatpush1.bf16.msra.mxu0 0
        %668 = vmatprep.subr.bf16.mxu0 0
        %669 = vmatpush1.bf16.msra.mxu0 0
        %670 = vmatprep.subr.bf16.mxu0 0
        %671 = vmatpush1.bf16.msra.mxu0 0
        %672 = vmatprep.subr.bf16.mxu0 0
        %673 = vmatpush1.bf16.msra.mxu0 0
        %674 = vmatprep.subr.bf16.mxu0 0
        %675 = vmatpush1.bf16.msra.mxu0 0
        %676 = vmatprep.subr.bf16.mxu0 0
        %677 = vmatpush1.bf16.msra.mxu0 0
        %678 = vmatprep.subr.bf16.mxu0 0
        %679 = vmatpush1.bf16.msra.mxu0 0
        %680 = vmatprep.subr.bf16.mxu0 0
        %681 = vmatpush1.bf16.msra.mxu0 0
        %682 = vmatprep.subr.bf16.mxu0 0
        %683 = vmatpush1.bf16.msra.mxu0 0
        %684 = vmatprep.subr.bf16.mxu0 0
        %685 = vmatpush1.bf16.msra.mxu0 0
        %686 = vmatprep.subr.bf16.mxu0 0
        %687 = vmatpush1.bf16.msra.mxu0 0
        %688 = vmatprep.subr.bf16.mxu0 0
        %689 = vmatpush1.bf16.msra.mxu0 0
        %690 = vmatprep.mubr.bf16.mxu0 0
        %691 = vmatmul.mubr.bf16.gmra.mrb[0].mxu0 %v574
        %v692 = vpop.f32.mrb[0].mxu0
        %v693 = vadd.f32 %v652, %v692
        %v694 = vpop.f32.mrb[0].mxu0
        %v695 = vpop.f32.mrb[0].mxu0
        %v696 = vadd.f32 %v655, %v695
        %v697 = vpop.f32.mrb[0].mxu0
        %698 = vdwg.mxu0
        %vm699 = vcmp.gt.f32.partialorder %v693, 0.0
        %vm700 = vcmp.gt.f32.partialorder %v696, 0.0
        %v701 = vmul.f32 %v693, 0.01
        %v702 = vmul.f32 %v696, 0.01
        %v703 = vsel %vm699, %v693, %v701
        %v704 = vsel %vm700, %v696, %v702
        %v705 = vpack.c.bf16 %v704, %v703
        %v707 = vshrl.u32 %v705, 16
        %v709 = vrot.slane %v707, 7
        %v710 = vshll.u32 %v705, 16
        %v712 = vor.u32 %v709, %v710
        %vm715 = vcmask 1040384
        %vm716 = vsmask.f32 256
        %vm717 = vmand %vm715, %vm716
        %v718 = vsel %vm717, 0, %v712
        %v719 = vsel %vm717, %v709, 0
        %722 = vrot.lane.b32.xlu0 %v718, 4
        %v723 = vpop.permute.xlu0 %722
        %724 = vrot.lane.b32.xlu0 %v719, 4
        %v725 = vpop.permute.xlu0 %724
        %vm726 = vcmask 31744
        %v729 = vsel %vm726, 0, %v723
        %v731 = vsel %vm726, 0, %v725
        %vm732 = vcmask 556032
        %v733 = vsel %vm732, %v729, 0
        %v734 = vsel %vm732, %v731, 0
        %736 = vrot.lane.b32.xlu0 %v733, 60
        %v737 = vpop.permute.xlu0 %736
        %738 = vrot.lane.b32.xlu0 %v733, 120
        %v739 = vpop.permute.xlu0 %738
        %v740 = vshrl.u32 %v733, 16
        %v742 = vshll.u32 %v733, 16
        %v744 = vrot.slane %v742, 1
        %v745 = vor.u32 %v740, %v744
        %v746 = vshll.u32 %v734, 16
        %v748 = vrot.slane %v746, 1
        %v749 = vsel %vm234, %v745, %v748
        %750 = vrot.lane.b32.xlu0 %v749, 64
        %v751 = vpop.permute.xlu0 %750
        %752 = vrot.lane.b32.xlu0 %v749, 124
        %v753 = vpop.permute.xlu0 %752
        %754 = vrot.lane.b32.xlu0 %v749, 56
        %v755 = vpop.permute.xlu0 %754
        %v757 = vrot.slane %v733, 1
        %v758 = vrot.slane %v734, 1
        %v759 = vsel %vm254, %v757, %v758
        %760 = vrot.lane.b32.xlu0 %v759, 60
        %v761 = vpop.permute.xlu0 %760
        %762 = vrot.lane.b32.xlu0 %v759, 120
        %v763 = vpop.permute.xlu0 %762
        %v765 = vsel %vm262, %v733, %v737
        %v769 = vsel %vm262, %v739, %v751
        %v773 = vsel %vm262, %v753, %v755
        %v777 = vsel %vm262, %v759, %v761
        %v779 = vld [vmem:[%s3] sm:$0xf]
        %v780 = vld [vmem:[%s3 + $0x4] sm:$0xf]
        %v781 = vld [vmem:[%s3 + $0x8] sm:$0xf]
        %v782 = vld [vmem:[%s3 + $0xc] sm:$0xf]
        %v783 = vld [vmem:[%s3 + $0x10] sm:$0xf]
        %v784 = vld [vmem:[%s3 + $0x14] sm:$0xf]
        %v785 = vld [vmem:[%s3 + $0x18] sm:$0xf]
        %v786 = vld [vmem:[%s3 + $0x1c] sm:$0xf]
        %v787 = vld [vmem:[%s3 + $0x20] sm:$0xf]
        %v788 = vld [vmem:[%s3 + $0x24] sm:$0xf]
        %v789 = vld [vmem:[%s3 + $0x28] sm:$0xf]
        %v790 = vld [vmem:[%s3 + $0x2c] sm:$0xf]
        %v791 = vld [vmem:[%s3 + $0x30] sm:$0xf]
        %v792 = vld [vmem:[%s3 + $0x34] sm:$0xf]
        %v793 = vld [vmem:[%s3 + $0x38] sm:$0xf]
        %v794 = vld [vmem:[%s3 + $0x3c] sm:$0xf]
        %v795 = vld [vmem:[%s3 + $0x40] sm:$0xf]
        %v796 = vld [vmem:[%s3 + $0x44] sm:$0xf]
        %v797 = vld [vmem:[%s3 + $0x48] sm:$0xf]
        %v798 = vld [vmem:[%s3 + $0x4c] sm:$0xf]
        %v799 = vld [vmem:[%s3 + $0x50] sm:$0xf]
        %v800 = vld [vmem:[%s3 + $0x54] sm:$0xf]
        %v801 = vld [vmem:[%s3 + $0x58] sm:$0xf]
        %v802 = vld [vmem:[%s3 + $0x5c] sm:$0xf]
        %v803 = vld [vmem:[%s3 + $0x60] sm:$0xf]
        %v804 = vld [vmem:[%s3 + $0x64] sm:$0xf]
        %v805 = vld [vmem:[%s3 + $0x68] sm:$0xf]
        %v806 = vld [vmem:[%s3 + $0x6c] sm:$0xf]
        %v807 = vld [vmem:[%s3 + $0x70] sm:$0xf]
        %v808 = vld [vmem:[%s3 + $0x74] sm:$0xf]
        %v809 = vld [vmem:[%s3 + $0x78] sm:$0xf]
        %v810 = vld [vmem:[%s3 + $0x7c] sm:$0xf]
        %v811 = vld [vmem:[%s3 + $0x80] sm:$0xf]
        %v812 = vld [vmem:[%s3 + $0x84] sm:$0xf]
        %v813 = vld [vmem:[%s3 + $0x88] sm:$0xf]
        %v814 = vld [vmem:[%s3 + $0x8c] sm:$0xf]
        %v815 = vld [vmem:[%s3 + $0x90] sm:$0xf]
        %v816 = vld [vmem:[%s3 + $0x94] sm:$0xf]
        %v817 = vld [vmem:[%s3 + $0x98] sm:$0xf]
        %v818 = vld [vmem:[%s3 + $0x9c] sm:$0xf]
        %v819 = vld [vmem:[%s3 + $0xa0] sm:$0xf]
        %v820 = vld [vmem:[%s3 + $0xa4] sm:$0xf]
        %v821 = vld [vmem:[%s3 + $0xa8] sm:$0xf]
        %v822 = vld [vmem:[%s3 + $0xac] sm:$0xf]
        %v823 = vld [vmem:[%s3 + $0xb0] sm:$0xf]
        %v824 = vld [vmem:[%s3 + $0xb4] sm:$0xf]
        %v825 = vld [vmem:[%s3 + $0xb8] sm:$0xf]
        %v826 = vld [vmem:[%s3 + $0xbc] sm:$0xf]
        %v827 = vld [vmem:[%s3 + $0xc0] sm:$0xf]
        %v828 = vld [vmem:[%s3 + $0xc4] sm:$0xf]
        %v829 = vld [vmem:[%s3 + $0xc8] sm:$0xf]
        %v830 = vld [vmem:[%s3 + $0xcc] sm:$0xf]
        %v831 = vld [vmem:[%s3 + $0xd0] sm:$0xf]
        %v832 = vld [vmem:[%s3 + $0xd4] sm:$0xf]
        %v833 = vld [vmem:[%s3 + $0xd8] sm:$0xf]
        %v834 = vld [vmem:[%s3 + $0xdc] sm:$0xf]
        %v835 = vld [vmem:[%s3 + $0xe0] sm:$0xf]
        %v836 = vld [vmem:[%s3 + $0xe4] sm:$0xf]
        %v837 = vld [vmem:[%s3 + $0xe8] sm:$0xf]
        %v838 = vld [vmem:[%s3 + $0xec] sm:$0xf]
        %v839 = vld [vmem:[%s3 + $0xf0] sm:$0xf]
        %v840 = vld [vmem:[%s3 + $0xf4] sm:$0xf]
        %v841 = vld [vmem:[%s3 + $0xf8] sm:$0xf]
        %v842 = vld [vmem:[%s3 + $0xfc] sm:$0xf]
        %v843 = vld [vmem:[%s3 + $0x100] sm:$0xf]
        %v844 = vld [vmem:[%s3 + $0x104] sm:$0xf]
        %v845 = vld [vmem:[%s3 + $0x108] sm:$0xf]
        %v846 = vld [vmem:[%s3 + $0x10c] sm:$0xf]
        %v847 = vld [vmem:[%s3 + $0x110] sm:$0xf]
        %v848 = vld [vmem:[%s3 + $0x114] sm:$0xf]
        %v849 = vld [vmem:[%s3 + $0x118] sm:$0xf]
        %v850 = vld [vmem:[%s3 + $0x11c] sm:$0xf]
        %v851 = vld [vmem:[%s4] sm:$0x1]
        %v853 = vlaneseq
        %v854 = vshrl.u32 %v853, 7
        %v855 = vsub.s32 0, %v854
        %v856 = vrot.slane %v851, %v855
        %v930 = vunpack.c.l.b16 %v779
        %v931 = vunpack.c.l.b16 %v780
        %v932 = vunpack.c.l.b16 %v781
        %v933 = vunpack.c.l.b16 %v782
        %v934 = vunpack.c.l.b16 %v783
        %v935 = vunpack.c.l.b16 %v784
        %v936 = vunpack.c.l.b16 %v785
        %v937 = vunpack.c.l.b16 %v786
        %v938 = vunpack.c.l.b16 %v787
        %v939 = vunpack.c.l.b16 %v788
        %v940 = vunpack.c.l.b16 %v789
        %v941 = vunpack.c.l.b16 %v790
        %v942 = vunpack.c.l.b16 %v791
        %v943 = vunpack.c.l.b16 %v792
        %v944 = vunpack.c.l.b16 %v793
        %v945 = vunpack.c.l.b16 %v794
        %v946 = vunpack.c.l.b16 %v795
        %v947 = vunpack.c.l.b16 %v796
        %v948 = vunpack.c.l.b16 %v797
        %v949 = vunpack.c.l.b16 %v798
        %v950 = vunpack.c.l.b16 %v799
        %v951 = vunpack.c.l.b16 %v800
        %v952 = vunpack.c.l.b16 %v801
        %v953 = vunpack.c.l.b16 %v802
        %v954 = vunpack.c.l.b16 %v803
        %v955 = vunpack.c.l.b16 %v804
        %v956 = vunpack.c.l.b16 %v805
        %v957 = vunpack.c.l.b16 %v806
        %v958 = vunpack.c.l.b16 %v807
        %v959 = vunpack.c.l.b16 %v808
        %v960 = vunpack.c.l.b16 %v809
        %v961 = vunpack.c.l.b16 %v810
        %v962 = vunpack.c.l.b16 %v811
        %v963 = vunpack.c.l.b16 %v812
        %v964 = vunpack.c.l.b16 %v813
        %v965 = vunpack.c.l.b16 %v814
        %v966 = vunpack.c.l.b16 %v815
        %v967 = vunpack.c.l.b16 %v816
        %v968 = vunpack.c.l.b16 %v817
        %v969 = vunpack.c.l.b16 %v818
        %v970 = vunpack.c.l.b16 %v819
        %v971 = vunpack.c.l.b16 %v820
        %v972 = vunpack.c.l.b16 %v821
        %v973 = vunpack.c.l.b16 %v822
        %v974 = vunpack.c.l.b16 %v823
        %v975 = vunpack.c.l.b16 %v824
        %v976 = vunpack.c.l.b16 %v825
        %v977 = vunpack.c.l.b16 %v826
        %v978 = vunpack.c.l.b16 %v827
        %v979 = vunpack.c.l.b16 %v828
        %v980 = vunpack.c.l.b16 %v829
        %v981 = vunpack.c.l.b16 %v830
        %v982 = vunpack.c.l.b16 %v831
        %v983 = vunpack.c.l.b16 %v832
        %v984 = vunpack.c.l.b16 %v833
        %v985 = vunpack.c.l.b16 %v834
        %v986 = vunpack.c.l.b16 %v835
        %v987 = vunpack.c.l.b16 %v836
        %v988 = vunpack.c.l.b16 %v837
        %v989 = vunpack.c.l.b16 %v838
        %v990 = vunpack.c.l.b16 %v839
        %v991 = vunpack.c.l.b16 %v840
        %v992 = vunpack.c.l.b16 %v841
        %v993 = vunpack.c.l.b16 %v842
        %v994 = vunpack.c.l.b16 %v843
        %v995 = vunpack.c.l.b16 %v844
        %v996 = vunpack.c.l.b16 %v845
        %v997 = vunpack.c.l.b16 %v846
        %v998 = vunpack.c.l.b16 %v847
        %v999 = vunpack.c.l.b16 %v848
        %v1000 = vunpack.c.l.b16 %v849
        %v1001 = vunpack.c.l.b16 %v850
        %v1002 = vpack.c.b16 %v931, %v930
        %v1003 = vpack.c.b16 %v933, %v932
        %v1004 = vpack.c.b16 %v935, %v934
        %v1005 = vpack.c.b16 %v937, %v936
        %v1006 = vpack.c.b16 %v939, %v938
        %v1007 = vpack.c.b16 %v941, %v940
        %v1008 = vpack.c.b16 %v943, %v942
        %v1009 = vpack.c.b16 %v945, %v944
        %v1010 = vpack.c.b16 %v947, %v946
        %v1011 = vpack.c.b16 %v949, %v948
        %v1012 = vpack.c.b16 %v951, %v950
        %v1013 = vpack.c.b16 %v953, %v952
        %v1014 = vpack.c.b16 %v955, %v954
        %v1015 = vpack.c.b16 %v957, %v956
        %v1016 = vpack.c.b16 %v959, %v958
        %v1017 = vpack.c.b16 %v961, %v960
        %v1018 = vpack.c.b16 %v963, %v962
        %v1019 = vpack.c.b16 %v965, %v964
        %v1020 = vpack.c.b16 %v967, %v966
        %v1021 = vpack.c.b16 %v969, %v968
        %v1022 = vpack.c.b16 %v971, %v970
        %v1023 = vpack.c.b16 %v973, %v972
        %v1024 = vpack.c.b16 %v975, %v974
        %v1025 = vpack.c.b16 %v977, %v976
        %v1026 = vpack.c.b16 %v979, %v978
        %v1027 = vpack.c.b16 %v981, %v980
        %v1028 = vpack.c.b16 %v983, %v982
        %v1029 = vpack.c.b16 %v985, %v984
        %v1030 = vpack.c.b16 %v987, %v986
        %v1031 = vpack.c.b16 %v989, %v988
        %v1032 = vpack.c.b16 %v991, %v990
        %v1033 = vpack.c.b16 %v993, %v992
        %v1034 = vpack.c.b16 %v995, %v994
        %v1035 = vpack.c.b16 %v997, %v996
        %v1036 = vpack.c.b16 %v999, %v998
        %v1037 = vpack.c.b16 %v1001, %v1000
        %v1075 = vsel %vm262, %v763, 0
        %1077 = vmatprep.subr.bf16.mxu0 0
        %1078 = vmatpush1.bf16.msra.mxu0 %v1002
        %1079 = vmatprep.subr.bf16.mxu0 0
        %1080 = vmatpush1.bf16.msra.mxu0 %v1003
        %1081 = vmatprep.subr.bf16.mxu0 0
        %1082 = vmatpush1.bf16.msra.mxu0 %v1004
        %1083 = vmatprep.subr.bf16.mxu0 0
        %1084 = vmatpush1.bf16.msra.mxu0 %v1005
        %1085 = vmatprep.subr.bf16.mxu0 0
        %1086 = vmatpush1.bf16.msra.mxu0 %v1006
        %1087 = vmatprep.subr.bf16.mxu0 0
        %1088 = vmatpush1.bf16.msra.mxu0 %v1007
        %1089 = vmatprep.subr.bf16.mxu0 0
        %1090 = vmatpush1.bf16.msra.mxu0 %v1008
        %1091 = vmatprep.subr.bf16.mxu0 0
        %1092 = vmatpush1.bf16.msra.mxu0 %v1009
        %1093 = vmatprep.subr.bf16.mxu0 0
        %1094 = vmatpush1.bf16.msra.mxu0 %v1010
        %1095 = vmatprep.subr.bf16.mxu0 0
        %1096 = vmatpush1.bf16.msra.mxu0 %v1011
        %1097 = vmatprep.subr.bf16.mxu0 0
        %1098 = vmatpush1.bf16.msra.mxu0 %v1012
        %1099 = vmatprep.subr.bf16.mxu0 0
        %1100 = vmatpush1.bf16.msra.mxu0 %v1013
        %1101 = vmatprep.subr.bf16.mxu0 0
        %1102 = vmatpush1.bf16.msra.mxu0 %v1014
        %1103 = vmatprep.subr.bf16.mxu0 0
        %1104 = vmatpush1.bf16.msra.mxu0 %v1015
        %1105 = vmatprep.subr.bf16.mxu0 0
        %1106 = vmatpush1.bf16.msra.mxu0 %v1016
        %1107 = vmatprep.subr.bf16.mxu0 0
        %1108 = vmatpush1.bf16.msra.mxu0 %v1017
        %1109 = vmatprep.mubr.bf16.mxu0 %v769
        %1110 = vmatmul.mubr.bf16.gmra.mrb[0].mxu0 %v765
        %v1111 = vpop.f32.mrb[0].mxu0
        %v1112 = vadd.f32 %v856, %v1111
        %v1113 = vpop.f32.mrb[0].mxu0
        %v1114 = vpop.f32.mrb[0].mxu0
        %v1115 = vadd.f32 %v856, %v1114
        %v1116 = vpop.f32.mrb[0].mxu0
        %1117 = vdwg.mxu0
        %1118 = vmatprep.subr.bf16.mxu0 0
        %1119 = vmatpush1.bf16.msra.mxu0 %v1018
        %1120 = vmatprep.subr.bf16.mxu0 0
        %1121 = vmatpush1.bf16.msra.mxu0 %v1019
        %1122 = vmatprep.subr.bf16.mxu0 0
        %1123 = vmatpush1.bf16.msra.mxu0 %v1020
        %1124 = vmatprep.subr.bf16.mxu0 0
        %1125 = vmatpush1.bf16.msra.mxu0 %v1021
        %1126 = vmatprep.subr.bf16.mxu0 0
        %1127 = vmatpush1.bf16.msra.mxu0 %v1022
        %1128 = vmatprep.subr.bf16.mxu0 0
        %1129 = vmatpush1.bf16.msra.mxu0 %v1023
        %1130 = vmatprep.subr.bf16.mxu0 0
        %1131 = vmatpush1.bf16.msra.mxu0 %v1024
        %1132 = vmatprep.subr.bf16.mxu0 0
        %1133 = vmatpush1.bf16.msra.mxu0 %v1025
        %1134 = vmatprep.subr.bf16.mxu0 0
        %1135 = vmatpush1.bf16.msra.mxu0 %v1026
        %1136 = vmatprep.subr.bf16.mxu0 0
        %1137 = vmatpush1.bf16.msra.mxu0 %v1027
        %1138 = vmatprep.subr.bf16.mxu0 0
        %1139 = vmatpush1.bf16.msra.mxu0 %v1028
        %1140 = vmatprep.subr.bf16.mxu0 0
        %1141 = vmatpush1.bf16.msra.mxu0 %v1029
        %1142 = vmatprep.subr.bf16.mxu0 0
        %1143 = vmatpush1.bf16.msra.mxu0 %v1030
        %1144 = vmatprep.subr.bf16.mxu0 0
        %1145 = vmatpush1.bf16.msra.mxu0 %v1031
        %1146 = vmatprep.subr.bf16.mxu0 0
        %1147 = vmatpush1.bf16.msra.mxu0 %v1032
        %1148 = vmatprep.subr.bf16.mxu0 0
        %1149 = vmatpush1.bf16.msra.mxu0 %v1033
        %1150 = vmatprep.mubr.bf16.mxu0 %v777
        %1151 = vmatmul.mubr.bf16.gmra.mrb[0].mxu0 %v773
        %v1152 = vpop.f32.mrb[0].mxu0
        %v1153 = vadd.f32 %v1112, %v1152
        %v1154 = vpop.f32.mrb[0].mxu0
        %v1155 = vpop.f32.mrb[0].mxu0
        %v1156 = vadd.f32 %v1115, %v1155
        %v1157 = vpop.f32.mrb[0].mxu0
        %1158 = vdwg.mxu0
        %1159 = vmatprep.subr.bf16.mxu0 0
        %1160 = vmatpush1.bf16.msra.mxu0 %v1034
        %1161 = vmatprep.subr.bf16.mxu0 0
        %1162 = vmatpush1.bf16.msra.mxu0 %v1035
        %1163 = vmatprep.subr.bf16.mxu0 0
        %1164 = vmatpush1.bf16.msra.mxu0 %v1036
        %1165 = vmatprep.subr.bf16.mxu0 0
        %1166 = vmatpush1.bf16.msra.mxu0 %v1037
        %1167 = vmatprep.subr.bf16.mxu0 0
        %1168 = vmatpush1.bf16.msra.mxu0 0
        %1169 = vmatprep.subr.bf16.mxu0 0
        %1170 = vmatpush1.bf16.msra.mxu0 0
        %1171 = vmatprep.subr.bf16.mxu0 0
        %1172 = vmatpush1.bf16.msra.mxu0 0
        %1173 = vmatprep.subr.bf16.mxu0 0
        %1174 = vmatpush1.bf16.msra.mxu0 0
        %1175 = vmatprep.subr.bf16.mxu0 0
        %1176 = vmatpush1.bf16.msra.mxu0 0
        %1177 = vmatprep.subr.bf16.mxu0 0
        %1178 = vmatpush1.bf16.msra.mxu0 0
        %1179 = vmatprep.subr.bf16.mxu0 0
        %1180 = vmatpush1.bf16.msra.mxu0 0
        %1181 = vmatprep.subr.bf16.mxu0 0
        %1182 = vmatpush1.bf16.msra.mxu0 0
        %1183 = vmatprep.subr.bf16.mxu0 0
        %1184 = vmatpush1.bf16.msra.mxu0 0
        %1185 = vmatprep.subr.bf16.mxu0 0
        %1186 = vmatpush1.bf16.msra.mxu0 0
        %1187 = vmatprep.subr.bf16.mxu0 0
        %1188 = vmatpush1.bf16.msra.mxu0 0
        %1189 = vmatprep.subr.bf16.mxu0 0
        %1190 = vmatpush1.bf16.msra.mxu0 0
        %1191 = vmatprep.mubr.bf16.mxu0 0
        %1192 = vmatmul.mubr.bf16.gmra.mrb[0].mxu0 %v1075
        %v1193 = vpop.f32.mrb[0].mxu0
        %v1194 = vadd.f32 %v1153, %v1193
        %v1195 = vpop.f32.mrb[0].mxu0
        %v1196 = vpop.f32.mrb[0].mxu0
        %v1197 = vadd.f32 %v1156, %v1196
        %v1198 = vpop.f32.mrb[0].mxu0
        %1199 = vdwg.mxu0
        %v1200 = vld [vmem:[%s222 + $0x1] sm:$0xff]
        %v1201 = vld [vmem:[%s222 + $0x9] sm:$0xff]
        %1204 = vrot.lane.b32.xlu0 %v1200, 124
        %v1205 = vpop.permute.xlu0 %1204
        %1206 = vrot.lane.b32.xlu0 %v1201, 124
        %v1207 = vpop.permute.xlu0 %1206
        %v1210 = vadd.f32 %v1194, %v1205
        %v1211 = vadd.f32 %v1197, %v1207
        %1212 = vst.msk [vmem:[%s217] sm:$0xff] %vm262, %v1210
        %1213 = vst.msk [vmem:[%s217 + $0x8] sm:$0xff] %vm262, %v1211
        %s1214 = sand.u32 %s137, 1
        %s1215 = scalar_lea.sflag [#allocation3], %s1214
        %s1216 = sand.u32 %s137, 1
        %s1217 = smul.addr %s1216, 16
        %s1218 = scalar_lea.vmem [#allocation2], %s1217
        // Predicated region
        $region41: #{tpu_custom_call.1} parent=39 // pred_check
          %p1219 = pneg %p147
        $region42: #{tpu_custom_call.1} parent=39 // pred_check_branch
          %1221 = sbr.rel (%p1219) target = $region44
        $region43: #{tpu_custom_call.1} parent=39 // pred_region
          %s1223 = ssub.s32 256, 256
          %1224 = vsyncadd %s1215, %s1223
          %s1225 = smul.addr %s19, 2
          %s1226 = smul.addr %s1225, 128
          %s1227 = scalar_lea.hbm %s5, %s1226
          %s1228 = sshll.u32 %s1218, 4
          %s1229 = int_to_ptr.vmem [resolvable:$true] %s1228
          %1234 = dma.vmem_to_hbm [thread:$0]  %s1229, 256, %s1227, %s1215, 128, 128, 8
        $region44: #{tpu_custom_call.1} parent=39 // pred_fallthru
          _
      $region40: #{tpu_custom_call.1} parent=5 // pred_fallthru
        _
      %p1235 = scmp.le.s32.totalorder 2, %s14
      // Predicated region
      $region45: #{tpu_custom_call.1} parent=5 // pred_check
        %p1236 = pneg %p1235
      $region46: #{tpu_custom_call.1} parent=5 // pred_check_branch
        %1238 = sbr.rel (%p1236) target = $region48
      $region47: #{tpu_custom_call.1} parent=5 // pred_region
        %s1239 = ssub.s32 %s14, 2
        // Predicated region
        $region49: #{tpu_custom_call.1} parent=47 // pred_check
          %p1240 = pneg %p153
        $region50: #{tpu_custom_call.1} parent=47 // pred_check_branch
          %1242 = sbr.rel (%p1240) target = $region52
        $region51: #{tpu_custom_call.1} parent=47 // pred_region
          %s1243 = sand.u32 %s138, 1
          %s1244 = scalar_lea.sflag [#allocation3], %s1243
          %s1245 = sand.u32 %s138, 1
          %s1246 = smul.addr %s1245, 16
          %s1247 = scalar_lea.vmem [#allocation2], %s1246
          %1248 = dma.done %s1244, 256
        $region52: #{tpu_custom_call.1} parent=47 // pred_fallthru
          _
      $region48: #{tpu_custom_call.1} parent=5 // pred_fallthru
        _
    $region6: #{tpu_custom_call.1} parent=1 // loop_footer
      %s18 = sadd.s32 1, %s14
    $region7: #{tpu_custom_call.1} parent=1 // loop_footer_branch
      %13 = sbr.rel target = $region3
    $region8: #{tpu_custom_call.1} parent=1 // loop_exit
      _
    %1249 = vsyncpa [#allocation3], 1
    %s1250 = scalar_lea.sflag [#allocation3], 1
    %1251 = vsyncpa %s1250, 1

</llo_original>
